<compile_context>
chip_gen: v5e
topology: v5e:2x2
jax: 0.10.0
libtpu: 0.0.40
codegen_flags: <defaults>
</compile_context>

<pallas_src>
import numpy as np
import jax
import jax.numpy as jnp
from jax.experimental import pallas as pl
from jax.experimental.pallas import tpu as pltpu

# MXU operand dtype (per perf review). Accumulation is always f32.
_COMPUTE_DTYPE = jnp.bfloat16


def _round_up(x, m):
    return ((x + m - 1) // m) * m


def _metrics_kernel(meta_ref, u_ref, cand_ref, slab_ref, out_ref):
    """All request/confirm metrics via two lane-aligned MXU matmuls.

    meta_ref : SMEM (2,)  int32   -> [nr, nc] runtime scalars (no recompiles)
    u_ref    : SMEM (1,)  float32 -> user_utt
    cand_ref : VMEM (2, K, D) bf16 -> [0] = cs rows, [1] = cv rows
    slab_ref : VMEM (2, D, P) bf16 -> [0] = A cols (ts|tq|0), [1] = B cols (tv|0)
    out_ref  : VMEM (K, P) float32 -> lane-dense metric rows
    """
    nr = meta_ref[0]
    u = u_ref[0]

    # s_a[k, p] = cs_k . A_p ;  s_b[k, p] = cv_k . B_p   (bf16 in, f32 acc)
    s_a = jnp.dot(cand_ref[0], slab_ref[0], preferred_element_type=jnp.float32)
    s_b = jnp.dot(cand_ref[1], slab_ref[1], preferred_element_type=jnp.float32)

    k, p = out_ref.shape
    lane = jax.lax.broadcasted_iota(jnp.int32, (k, p), 1)
    # lanes [0, nr)     : request metrics -> (cs.ts) * (cv.tv) * u
    # lanes [nr, nr+nc) : confirm metrics -> (cs.tq) * u
    # lanes >= nr+nc    : A columns are zero-padded, so s_a (hence out) is 0.
    factor2 = jnp.where(lane < nr, s_b, 1.0)
    out_ref[...] = s_a * factor2 * u          # single unmasked lane-dense store


@jax.jit
def _context_metrics(meta, u, cand, slab):
    """One pallas_call for all K candidate pairs against the packed slab."""
    K = cand.shape[1]
    P = slab.shape[2]
    smem = pl.BlockSpec(memory_space=pltpu.MemorySpace.SMEM)
    vmem = pl.BlockSpec(memory_space=pltpu.MemorySpace.VMEM)
    return pl.pallas_call(
        _metrics_kernel,
        out_shape=jax.ShapeDtypeStruct((K, P), jnp.float32),
        in_specs=[smem, smem, vmem, vmem],
        out_specs=vmem,
    )(meta, u, cand, slab)


def _pack_prev_sysout(prev_sysout, D):
    """Host-side NumPy packing of prev_sysout into one (2, D, P) f32 slab."""
    ts_list, tv_list, tq_list = [], [], []
    for element in prev_sysout:
        if isinstance(element, (list, tuple)):
            ts_list.append(np.asarray(element[0], np.float32).reshape(-1))
            tv_list.append(np.asarray(element[1], np.float32).reshape(-1))
        elif isinstance(element, (np.ndarray, jnp.ndarray)) or hasattr(element, "__array__"):
            tq_list.append(np.asarray(element, np.float32).reshape(-1))
        else:
            raise ValueError(
                "ERROR in ContextModeling.forward. Input is not a tensor or tuple. \n")
    nr, nc = len(ts_list), len(tq_list)
    P = _round_up(max(nr + nc, 1), 128)       # lane-dense output width
    slab = np.zeros((2, D, P), np.float32)
    if nr:
        slab[0, :, :nr] = np.stack(ts_list, axis=1)         # (D, nr)
        slab[1, :, :nr] = np.stack(tv_list, axis=1)
    if nc:
        slab[0, :, nr:nr + nc] = np.stack(tq_list, axis=1)  # (D, nc)
    return slab, nr, nc


def context_modeler_forward_batched(prev_sysout, candidate_pairs, user_utt):
    """Score K candidate pairs against the same prev_sysout in one kernel call.

    Returns a list of K dicts {'mr': [...], 'mc': [...]}.
    """
    if not candidate_pairs:
        return []
    cs0 = np.asarray(candidate_pairs[0][0], np.float32).reshape(-1)
    D = cs0.shape[0]

    slab, nr, nc = _pack_prev_sysout(prev_sysout, D)
    if nr + nc == 0:
        return [{'mc': [], 'mr': []} for _ in candidate_pairs]

    K = len(candidate_pairs)
    cand = np.zeros((2, K, D), np.float32)
    for k, pair in enumerate(candidate_pairs):
        cand[0, k] = np.asarray(pair[0], np.float32).reshape(-1)
        cand[1, k] = np.asarray(pair[1], np.float32).reshape(-1)

    meta = np.array([nr, nc], np.int32)
    u = np.array([float(np.asarray(user_utt, np.float32).reshape(-1)[0])], np.float32)

    out_dev = _context_metrics(meta, u,
                               cand.astype(_COMPUTE_DTYPE),
                               slab.astype(_COMPUTE_DTYPE))
    jax.block_until_ready(out_dev)
    host = np.asarray(out_dev)                # single device->host transfer, (K, P)

    results = []
    for k in range(K):
        row = host[k]
        results.append({'mr': [row[i] for i in range(nr)],
                        'mc': [row[nr + j] for j in range(nc)]})
    return results


def context_modeler_forward(prev_sysout, candidate_pair, user_utt):
    """JAX/Pallas re-implementation of ContextModeler.forward (single pair)."""
    return context_modeler_forward_batched(prev_sysout, [candidate_pair], user_utt)[0]


def _reference_forward(prev_sysout, candidate_pair, user_utt):
    """Pure NumPy (f64) reference matching the PyTorch semantics."""
    cs = np.asarray(candidate_pair[0], np.float64).reshape(-1)
    cv = np.asarray(candidate_pair[1], np.float64).reshape(-1)
    u = float(np.asarray(user_utt, np.float64).reshape(-1)[0])
    out = {'mc': [], 'mr': []}
    for element in prev_sysout:
        if isinstance(element, (list, tuple)):
            ts = np.asarray(element[0], np.float64).reshape(-1)
            tv = np.asarray(element[1], np.float64).reshape(-1)
            out['mr'].append(np.dot(cs, ts) * np.dot(cv, tv) * u)
        else:
            tq = np.asarray(element, np.float64).reshape(-1)
            out['mc'].append(np.dot(cs, tq) * u)
    return out


if __name__ == "__main__":
    key = jax.random.PRNGKey(0)
    D = 32               # hidden / embedding dim
    n_pairs = 3          # request-path elements ([ts, tv] pairs)
    n_single = 2         # confirm-path elements (single tensors)
    n_cand_pairs = 3     # batched candidate pairs (first one = single-pair path)

    total_rows = 2 * n_pairs + n_single + 2 * n_cand_pairs
    vecs = np.asarray(jax.random.normal(key, (total_rows, D), jnp.float32))  # one D2H
    user_utt = np.float32(0.75)

    idx = 0
    prev_sysout = []
    for _ in range(n_pairs):
        prev_sysout.append([vecs[idx:idx + 1], vecs[idx + 1:idx + 2]]); idx += 2
    for _ in range(n_single):
        prev_sysout.append(vecs[idx:idx + 1]); idx += 1
    candidate_pairs = []
    for _ in range(n_cand_pairs):
        candidate_pairs.append((vecs[idx:idx + 1], vecs[idx + 1:idx + 2])); idx += 2

    # Single-pair forward (original module semantics).
    result = context_modeler_forward(prev_sysout, candidate_pairs[0], user_utt)
    # Batched forward: K candidate pairs in one pallas_call.
    batched = context_modeler_forward_batched(prev_sysout, candidate_pairs, user_utt)

    # Correctness check vs pure-NumPy reference. Tolerance is relaxed because the
    # kernel deliberately uses bf16 MXU operands (f32 accumulation) per the
    # performance review.
    refs = [_reference_forward(prev_sysout, cp, user_utt) for cp in candidate_pairs]

    def _check(got, ref):
        good = (len(got['mr']) == len(ref['mr'])) and (len(got['mc']) == len(ref['mc']))
        for key_ in ('mr', 'mc'):
            for a, b in zip(got[key_], ref[key_]):
                good = good and bool(np.allclose(np.float64(a), b, rtol=3e-2, atol=3e-1))
        return good

    ok = _check(result, refs[0])
    for got, ref in zip(batched, refs):
        ok = ok and _check(got, ref)

    print("KERNEL_OK" if ok else "MISMATCH")
</pallas_src>

<mosaic_0001>
module attributes {stable_mosaic.version = 11 : i64} {
  func.func @_metrics_kernel(%arg0: memref<2xi32, #tpu.memory_space<smem>>, %arg1: memref<1xf32, #tpu.memory_space<smem>>, %arg2: memref<2x1x32xbf16, #tpu.memory_space<vmem>>, %arg3: memref<2x32x128xbf16, #tpu.memory_space<vmem>>, %arg4: memref<1x128xf32, #tpu.memory_space<vmem>>) attributes {dimension_semantics = [], scalar_prefetch = 0 : i64, scratch_operands = 0 : i64, tpu.core_type = #tpu.core_type<tc>} {
    %c0 = arith.constant 0 : index
    %0 = memref.load %arg0[%c0] : memref<2xi32, #tpu.memory_space<smem>>
    %c0_0 = arith.constant 0 : index
    %1 = memref.load %arg1[%c0_0] : memref<1xf32, #tpu.memory_space<smem>>
    %c0_1 = arith.constant 0 : index
    %c0_2 = arith.constant 0 : index
    %c0_3 = arith.constant 0 : index
    %2 = vector.load %arg2[%c0_1, %c0_2, %c0_3] : memref<2x1x32xbf16, #tpu.memory_space<vmem>>, vector<1x1x32xbf16>
    %3 = vector.shape_cast %2 : vector<1x1x32xbf16> to vector<1x32xbf16>
    %c0_4 = arith.constant 0 : index
    %c0_5 = arith.constant 0 : index
    %c0_6 = arith.constant 0 : index
    %4 = vector.load %arg3[%c0_4, %c0_5, %c0_6] : memref<2x32x128xbf16, #tpu.memory_space<vmem>>, vector<1x32x128xbf16>
    %5 = vector.shape_cast %4 : vector<1x32x128xbf16> to vector<32x128xbf16>
    %cst = arith.constant dense<0.000000e+00> : vector<1x128xf32>
    %6 = tpu.matmul %3, %5, %cst {dimension_numbers = #tpu.dot_dimension_numbers<[1], [0], [0], [1], [0, 0, 1, 1], [], []>} : vector<1x32xbf16>, vector<32x128xbf16>, vector<1x128xf32> -> vector<1x128xf32>
    %c1 = arith.constant 1 : index
    %c0_7 = arith.constant 0 : index
    %c0_8 = arith.constant 0 : index
    %7 = vector.load %arg2[%c1, %c0_7, %c0_8] : memref<2x1x32xbf16, #tpu.memory_space<vmem>>, vector<1x1x32xbf16>
    %8 = vector.shape_cast %7 : vector<1x1x32xbf16> to vector<1x32xbf16>
    %c1_9 = arith.constant 1 : index
    %c0_10 = arith.constant 0 : index
    %c0_11 = arith.constant 0 : index
    %9 = vector.load %arg3[%c1_9, %c0_10, %c0_11] : memref<2x32x128xbf16, #tpu.memory_space<vmem>>, vector<1x32x128xbf16>
    %10 = vector.shape_cast %9 : vector<1x32x128xbf16> to vector<32x128xbf16>
    %cst_12 = arith.constant dense<0.000000e+00> : vector<1x128xf32>
    %11 = tpu.matmul %8, %10, %cst_12 {dimension_numbers = #tpu.dot_dimension_numbers<[1], [0], [0], [1], [0, 0, 1, 1], [], []>} : vector<1x32xbf16>, vector<32x128xbf16>, vector<1x128xf32> -> vector<1x128xf32>
    %12 = tpu.iota {dimensions = array<i32: 1>} : vector<1x128xi32>
    %13 = vector.broadcast %0 : i32 to vector<1x128xi32>
    %14 = arith.cmpi slt, %12, %13 : vector<1x128xi32>
    %cst_13 = arith.constant 1.000000e+00 : f32
    %15 = vector.broadcast %cst_13 : f32 to vector<1x128xf32>
    %16 = arith.select %14, %11, %15 : vector<1x128xi1>, vector<1x128xf32>
    %17 = arith.mulf %6, %16 : vector<1x128xf32>
    %18 = vector.broadcast %1 : f32 to vector<1x128xf32>
    %19 = arith.mulf %17, %18 : vector<1x128xf32>
    %c0_14 = arith.constant 0 : index
    %c0_15 = arith.constant 0 : index
    %20 = vector.load %arg4[%c0_14, %c0_15] : memref<1x128xf32, #tpu.memory_space<vmem>>, vector<1x128xf32>
    tpu.vector_store %arg4[%c0_14, %c0_15], %19 {strides = array<i32>} : memref<1x128xf32, #tpu.memory_space<vmem>>, vector<1x128xf32>,
    return
  }
}

</mosaic_0001>

<llo_original>
// kernel: _context_metrics.1
$region0: #{_context_metrics.1}
  #allocation0 [shape = 'u32[]', space=smem, size = 0x4, offset = 0x4, fixed_abs, tag = 'smem constant byte address 0x4 - core index']
  #allocation1 [shape = 'u32[72,128]{1,0:T(1,128)}', space=vmem, size = 0x9000, scoped, tag = 'internal scratch']
  #allocation2 [shape = 'f32[1]{0:T(128)S(6)}', space=smem, size = 0x200, scoped, tag = 'scoped memory for _context_metrics.1']
  %s0 = inlined_call_operand.vmem [shape: s32[2], index: 0, kind: input, shape index: {}]
  %s1 = inlined_call_operand.<no memory space> [shape: f32[1], index: 1, kind: input, shape index: {}]
  %s2 = inlined_call_operand.vmem [shape: bf16[2,1,32], index: 2, kind: input, shape index: {}]
  %s3 = inlined_call_operand.hbm [shape: bf16[2,32,128], index: 3, kind: input, shape index: {}]
  %s4 = inlined_call_operand.hbm [shape: f32[1,128], index: 4, kind: output, shape index: {}]
  %s5 = sld [smem:[#allocation0]]
  $region34: #{_context_metrics.1} parent=0
    _
  %s7 = ssub.s32 1, %s5
  %s8 = scalar_select 0, %s7, %s5
  %9 = sst [smem:[#allocation2]] %s1
  $region1: #{_context_metrics.1} parent=0
    #allocation3 [shape = 'u8[512]{0}', space=smem, size = 0x200, scoped, tag = 'input window, operand 0, single buffered']
    #allocation4 [shape = 's32[1]{0}', space=sflag, size = 0x4, scoped, tag = 'scoped memory for _context_metrics.1']
    #allocation5 [shape = 's32[1]{0}', space=sflag, size = 0x4, scoped, tag = 'scoped memory for _context_metrics.1']
    #allocation6 [shape = 's32[1]{0}', space=sflag, size = 0x4, scoped, tag = 'scoped memory for _context_metrics.1']
    #allocation7 [shape = 'u8[16384]{0}', space=vmem, size = 0x4000, scoped, tag = 'input window, operand 3, single buffered']
    #allocation8 [shape = 'u8[512]{0}', space=vmem, size = 0x400, scoped, tag = 'output window, operand 0, single buffered']
    %10 = vsyncpa [#allocation6], 0
    %11 = vsyncpa [#allocation4], 0
    %12 = vsyncpa [#allocation5], 0
    // Predicated region
    $region2: #{_context_metrics.1} parent=1 // pred_check
      _
    $region3: #{_context_metrics.1} parent=1 // pred_check_branch
      %14 = sbr.rel (0) target = $region5
    $region4: #{_context_metrics.1} parent=1 // pred_region
      %16 = vsyncadd [#allocation6], 0
      %s18 = sshll.u32 %s0, 4
      %s19 = int_to_ptr.vmem [resolvable:$true] %s18
      %21 = dma.vmem_to_smem %s19, 16, [#allocation3], [#allocation6]
    $region5: #{_context_metrics.1} parent=1 // pred_fallthru
      _
    // Predicated region
    $region6: #{_context_metrics.1} parent=1 // pred_check
      _
    $region7: #{_context_metrics.1} parent=1 // pred_check_branch
      %23 = sbr.rel (0) target = $region9
    $region8: #{_context_metrics.1} parent=1 // pred_region
      _
    $region9: #{_context_metrics.1} parent=1 // pred_fallthru
      _
    // Predicated region
    $region10: #{_context_metrics.1} parent=1 // pred_check
      _
    $region11: #{_context_metrics.1} parent=1 // pred_check_branch
      %25 = sbr.rel (0) target = $region13
    $region12: #{_context_metrics.1} parent=1 // pred_region
      _
    $region13: #{_context_metrics.1} parent=1 // pred_fallthru
      _
    // Predicated region
    $region14: #{_context_metrics.1} parent=1 // pred_check
      _
    $region15: #{_context_metrics.1} parent=1 // pred_check_branch
      %27 = sbr.rel (0) target = $region17
    $region16: #{_context_metrics.1} parent=1 // pred_region
      %29 = vsyncadd [#allocation4], 0
      %s30 = sshll.u32 %s3, 4
      %s31 = int_to_ptr.hbm [resolvable:$true] %s30
      %s32 = sshll.u32 [#allocation7], 4
      %s33 = int_to_ptr.vmem [resolvable:$true] %s32
      %38 = dma.hbm_to_vmem [thread:$0]  %s31, 512, %s33, [#allocation4], 64, 64, 4
    $region17: #{_context_metrics.1} parent=1 // pred_fallthru
      _
    // Predicated region
    $region18: #{_context_metrics.1} parent=1 // pred_check
      _
    $region19: #{_context_metrics.1} parent=1 // pred_check_branch
      %40 = sbr.rel (0) target = $region21
    $region20: #{_context_metrics.1} parent=1 // pred_region
      %42 = dma.done [#allocation6], 16
    $region21: #{_context_metrics.1} parent=1 // pred_fallthru
      _
    // Predicated region
    $region22: #{_context_metrics.1} parent=1 // pred_check
      _
    $region23: #{_context_metrics.1} parent=1 // pred_check_branch
      %44 = sbr.rel (0) target = $region25
    $region24: #{_context_metrics.1} parent=1 // pred_region
      %46 = dma.done [#allocation4], 512
    $region25: #{_context_metrics.1} parent=1 // pred_fallthru
      _
    %47 = sfence
    %s49 = sld [smem:[#allocation3]]
    %s50 = sld [smem:[#allocation2]]
    %v51 = vld [vmem:[%s2] sm:$0x1]
    %v52 = vld [vmem:[#allocation7] sm:$0xf]
    %v53 = vld [vmem:[#allocation7 + $0x4] sm:$0xf]
    %v54 = vld [vmem:[#allocation7 + $0x8] sm:$0xf]
    %v55 = vld [vmem:[#allocation7 + $0xc] sm:$0xf]
    %v60 = vunpack.c.l.b16 %v52
    %v61 = vunpack.c.l.b16 %v53
    %v62 = vunpack.c.l.b16 %v54
    %v63 = vunpack.c.l.b16 %v55
    %v64 = vpack.c.b16 %v61, %v60
    %v65 = vpack.c.b16 %v63, %v62
    %vm68 = vcmask 261120
    %v70 = vsel %vm68, %v51, 0
    %72 = vmatpush.bf16.msra.mxu0 0
    %73 = vmatpush.bf16.msra.mxu0 0
    %74 = vmatpush.bf16.msra.mxu0 0
    %75 = vmatpush.bf16.msra.mxu0 0
    %76 = vmatpush.bf16.msra.mxu0 0
    %77 = vmatpush.bf16.msra.mxu0 0
    %78 = vmatpush.bf16.msra.mxu0 %v65
    %79 = vmatpush.bf16.msra.mxu0 %v64
    %80 = vmatmul.bf16.gmra.mxu0 %v70
    %v81 = vpop.f32.mrf.mxu0
    %v82 = vadd.f32 0.0, %v81
    %v83 = vpop.f32.mrf.mxu0
    %84 = vdwg.mxu0
    %s85 = scalar_lea.vmem %s2, 1
    %v86 = vld [vmem:[%s85] sm:$0x1]
    %s87 = scalar_lea.vmem [#allocation7], 16
    %v88 = vld [vmem:[%s87] sm:$0xf]
    %v89 = vld [vmem:[%s87 + $0x4] sm:$0xf]
    %v90 = vld [vmem:[%s87 + $0x8] sm:$0xf]
    %v91 = vld [vmem:[%s87 + $0xc] sm:$0xf]
    %v96 = vunpack.c.l.b16 %v88
    %v97 = vunpack.c.l.b16 %v89
    %v98 = vunpack.c.l.b16 %v90
    %v99 = vunpack.c.l.b16 %v91
    %v100 = vpack.c.b16 %v97, %v96
    %v101 = vpack.c.b16 %v99, %v98
    %v105 = vsel %vm68, %v86, 0
    %107 = vmatpush.bf16.msra.mxu0 0
    %108 = vmatpush.bf16.msra.mxu0 0
    %109 = vmatpush.bf16.msra.mxu0 0
    %110 = vmatpush.bf16.msra.mxu0 0
    %111 = vmatpush.bf16.msra.mxu0 0
    %112 = vmatpush.bf16.msra.mxu0 0
    %113 = vmatpush.bf16.msra.mxu0 %v101
    %114 = vmatpush.bf16.msra.mxu0 %v100
    %115 = vmatmul.bf16.gmra.mxu0 %v105
    %v116 = vpop.f32.mrf.mxu0
    %v117 = vadd.f32 0.0, %v116
    %v118 = vpop.f32.mrf.mxu0
    %119 = vdwg.mxu0
    %v120 = vlaneseq
    %v121 = vand.u32 %v120, 127
    %v122 = vstv %s49
    %vm123 = vcmp.lt.s32.totalorder %v121, %v122
    %v124 = vsel %vm123, %v117, 1.0
    %v125 = vmul.f32 %v82, %v124
    %v126 = vstv %s50
    %v127 = vmul.f32 %v125, %v126
    %128 = vst [vmem:[#allocation8] sm:$0x1] %v127
    // Predicated region
    $region26: #{_context_metrics.1} parent=1 // pred_check
      _
    $region27: #{_context_metrics.1} parent=1 // pred_check_branch
      %130 = sbr.rel (0) target = $region29
    $region28: #{_context_metrics.1} parent=1 // pred_region
      %132 = vsyncadd [#allocation5], 0
      %s134 = sshll.u32 [#allocation8], 4
      %s135 = int_to_ptr.vmem [resolvable:$true] %s134
      %s136 = sshll.u32 %s4, 4
      %s137 = int_to_ptr.hbm [resolvable:$true] %s136
      %139 = dma.vmem_to_hbm [thread:$0]  %s135, 16, %s137, [#allocation5]
    $region29: #{_context_metrics.1} parent=1 // pred_fallthru
      _
    // Predicated region
    $region30: #{_context_metrics.1} parent=1 // pred_check
      _
    $region31: #{_context_metrics.1} parent=1 // pred_check_branch
      %141 = sbr.rel (0) target = $region33
    $region32: #{_context_metrics.1} parent=1 // pred_region
      %143 = dma.done [#allocation5], 16
    $region33: #{_context_metrics.1} parent=1 // pred_fallthru
      _
    %144 = vsyncpa [#allocation4], 1
    %145 = vsyncpa [#allocation5], 1
    %146 = vsyncpa [#allocation6], 1

</llo_original>
